<compile_context>
chip_gen: v7x
topology: tpu7x:2x2x1
jax: 0.10.0
libtpu: 0.0.40
codegen_flags: <defaults>
</compile_context>

<pallas_src>
import math

import jax
import jax.numpy as jnp
from jax import lax
from jax.experimental import pallas as pl
from jax.experimental.pallas import tpu as pltpu


def _dwconv_kernel(x_ref, w_ref, b_ref, o_ref):
    # x_ref: (1, H, W, TC)   input tile (one batch element, one channel tile)
    # w_ref: (9, 1, TC)      depthwise taps, k = 3*i + j  (i=row tap, j=col tap)
    # b_ref: (1, 1, TC)      bias
    # o_ref: (1, H, W, TC)   output tile
    x = x_ref[0].astype(jnp.float32)            # [H, W, TC], compute in f32
    H, W, TC = x.shape

    # Column shifts (sublane axis): xm1[h,w] = x[h,w-1], xp1[h,w] = x[h,w+1],
    # zero outside the image. pltpu.roll runs on the XLU (free slot here).
    col = lax.broadcasted_iota(jnp.int32, (1, W, 1), 1)
    x_m1 = jnp.where(col >= 1, pltpu.roll(x, 1, axis=1), 0.0)
    x_p1 = jnp.where(col <= W - 2, pltpu.roll(x, W - 1, axis=1), 0.0)
    cols = (x_m1, x, x_p1)

    # Row-tap partial sums: r_i[h] = sum_j w[3i+j] * x[h, w+j-1]
    def rowsum(i):
        acc = w_ref[3 * i] * cols[0]            # (1, TC) broadcasts over (H, W, TC)
        acc = acc + w_ref[3 * i + 1] * cols[1]
        acc = acc + w_ref[3 * i + 2] * cols[2]
        return acc

    r0, r1, r2 = rowsum(0), rowsum(1), rowsum(2)

    # out[h] = bias + r0[h-1] + r1[h] + r2[h+1]   (zero rows outside the image).
    out = r1 + b_ref[...]
    if H > 1:
        zrow = jnp.zeros((1, W, TC), jnp.float32)
        out = out + jnp.concatenate([zrow, r0[: H - 1]], axis=0)
        out = out + jnp.concatenate([r2[1:], zrow], axis=0)

    o_ref[0] = out.astype(o_ref.dtype)


def _pick_channel_tile(C, H, W, itemsize, budget_bytes=2 << 20):
    """Largest 128-multiple divisor of C whose x-block fits the VMEM budget."""
    if C % 128 != 0:
        return C                                 # full-C block (correct, maybe masked lanes)
    cands = [t for t in range(C, 0, -128) if C % t == 0]
    for t in cands:
        if H * W * t * itemsize <= budget_bytes:
            return t
    return cands[-1]                             # 128


def dwconv(x, H, W, weight, bias):
    """DWConv.forward.  x: [B, N, C] with N = H*W; weight: [C, 1, 3, 3]; bias: [C].

    Returns [B, N, C].
    """
    B, N, C = x.shape
    assert N == H * W, "N must equal H*W"
    assert weight.shape == (C, 1, 3, 3)

    xi = x.reshape(B, H, W, C)                                   # free reshape, channels-last
    w9 = jnp.transpose(weight.reshape(C, 9), (1, 0)).reshape(9, 1, C).astype(jnp.float32)
    b3 = bias.reshape(1, 1, C).astype(jnp.float32)

    TC = _pick_channel_tile(C, H, W, xi.dtype.itemsize)
    grid = (B, C // TC)

    itemsize = xi.dtype.itemsize
    cost = pl.CostEstimate(
        flops=2 * 9 * B * N * C,
        transcendentals=0,
        bytes_accessed=2 * B * N * C * itemsize + (9 + 1) * C * 4,
    )

    out = pl.pallas_call(
        _dwconv_kernel,
        out_shape=jax.ShapeDtypeStruct((B, H, W, C), x.dtype),
        grid=grid,
        in_specs=[
            pl.BlockSpec((1, H, W, TC), lambda b, c: (b, 0, 0, c)),
            pl.BlockSpec((9, 1, TC), lambda b, c: (0, 0, c)),
            pl.BlockSpec((1, 1, TC), lambda b, c: (0, 0, c)),
        ],
        out_specs=pl.BlockSpec((1, H, W, TC), lambda b, c: (b, 0, 0, c)),
        compiler_params=pltpu.CompilerParams(
            dimension_semantics=("parallel", "parallel"),
            vmem_limit_bytes=32 * 1024 * 1024,
        ),
        cost_estimate=cost,
    )(xi, w9, b3)

    return out.reshape(B, N, C)


def _reference(x, H, W, weight, bias):
    """Mirror of the PyTorch forward using XLA's grouped conv."""
    B, N, C = x.shape
    xi = jnp.transpose(x, (0, 2, 1)).reshape(B, C, H, W)
    y = lax.conv_general_dilated(
        xi, weight, window_strides=(1, 1), padding=((1, 1), (1, 1)),
        dimension_numbers=("NCHW", "OIHW", "NCHW"), feature_group_count=C)
    y = y + bias.reshape(1, C, 1, 1)
    return jnp.transpose(y.reshape(B, C, N), (0, 2, 1))


if __name__ == "__main__":
    # Small shapes consistent with DWConv: x is [B, N, C] tokens, N = H*W.
    # C=128 keeps the channel (lane) dimension 128-aligned.
    B, C, H, W = 2, 128, 16, 16
    N = H * W

    key = jax.random.PRNGKey(0)
    kx, kw, kb = jax.random.split(key, 3)

    x = jax.random.normal(kx, (B, N, C), dtype=jnp.float32)

    # Conv2d(dim, dim, 3, 1, 1, groups=dim): weight [C, 1, 3, 3], bias [C]
    # (PyTorch default init: uniform(-1/sqrt(fan_in), 1/sqrt(fan_in)), fan_in=9).
    bound = 1.0 / math.sqrt(9.0)
    weight = jax.random.uniform(kw, (C, 1, 3, 3), jnp.float32, -bound, bound)
    bias = jax.random.uniform(kb, (C,), jnp.float32, -bound, bound)

    out = dwconv(x, H, W, weight, bias)
    out = jax.block_until_ready(out)

    ref = jax.block_until_ready(_reference(x, H, W, weight, bias))

    assert out.shape == (B, N, C)
    max_err = float(jnp.max(jnp.abs(out - ref)))
    assert jnp.allclose(out, ref, atol=1e-4, rtol=1e-4), max_err
    print("KERNEL_OK")
</pallas_src>

<mosaic_0001>
module attributes {stable_mosaic.version = 11 : i64} {
  func.func @_dwconv_kernel(%arg0: i32, %arg1: i32, %arg2: memref<1x16x16x128xf32, #tpu.memory_space<vmem>>, %arg3: memref<9x1x128xf32, #tpu.memory_space<vmem>>, %arg4: memref<1x1x128xf32, #tpu.memory_space<vmem>>, %arg5: memref<1x16x16x128xf32, #tpu.memory_space<vmem>>) attributes {dimension_semantics = [#tpu.dimension_semantics<parallel>, #tpu.dimension_semantics<parallel>], iteration_bounds = array<i64: 2, 1>, scalar_prefetch = 0 : i64, scratch_operands = 0 : i64, tpu.core_type = #tpu.core_type<tc>, window_params = [{transform_indices = @transform_0, window_bounds = array<i64: 1, 16, 16, 128>}, {transform_indices = @transform_1, window_bounds = array<i64: 9, 1, 128>}, {transform_indices = @transform_2, window_bounds = array<i64: 1, 1, 128>}, {transform_indices = @transform_3, window_bounds = array<i64: 1, 16, 16, 128>}]} {
    %c0 = arith.constant 0 : index
    %c0_0 = arith.constant 0 : index
    %c0_1 = arith.constant 0 : index
    %c0_2 = arith.constant 0 : index
    %0 = vector.load %arg2[%c0, %c0_0, %c0_1, %c0_2] : memref<1x16x16x128xf32, #tpu.memory_space<vmem>>, vector<1x16x16x128xf32>
    %1 = vector.shape_cast %0 : vector<1x16x16x128xf32> to vector<16x16x128xf32>
    %2 = tpu.iota {dimensions = array<i32: 1>} : vector<1x16x1xi32>
    %c1_i32 = arith.constant 1 : i32
    %3 = vector.broadcast %c1_i32 : i32 to vector<1x16x1xi32>
    %4 = arith.cmpi sge, %2, %3 : vector<1x16x1xi32>
    %c1_i32_3 = arith.constant 1 : i32
    %5 = tpu.dynamic_rotate %1 by %c1_i32_3 dim 1 : vector<16x16x128xf32>, i32 -> vector<16x16x128xf32>
    %cst = arith.constant 0.000000e+00 : f32
    %6 = vector.shape_cast %4 : vector<1x16x1xi1> to vector<1x16x1xi1>
    %7 = vector.broadcast %6 : vector<1x16x1xi1> to vector<16x16x128xi1>
    %8 = vector.broadcast %cst : f32 to vector<16x16x128xf32>
    %9 = arith.select %7, %5, %8 : vector<16x16x128xi1>, vector<16x16x128xf32>
    %c14_i32 = arith.constant 14 : i32
    %10 = vector.broadcast %c14_i32 : i32 to vector<1x16x1xi32>
    %11 = arith.cmpi sle, %2, %10 : vector<1x16x1xi32>
    %c15_i32 = arith.constant 15 : i32
    %12 = tpu.dynamic_rotate %1 by %c15_i32 dim 1 : vector<16x16x128xf32>, i32 -> vector<16x16x128xf32>
    %cst_4 = arith.constant 0.000000e+00 : f32
    %13 = vector.shape_cast %11 : vector<1x16x1xi1> to vector<1x16x1xi1>
    %14 = vector.broadcast %13 : vector<1x16x1xi1> to vector<16x16x128xi1>
    %15 = vector.broadcast %cst_4 : f32 to vector<16x16x128xf32>
    %16 = arith.select %14, %12, %15 : vector<16x16x128xi1>, vector<16x16x128xf32>
    %c0_5 = arith.constant 0 : index
    %c0_6 = arith.constant 0 : index
    %c0_7 = arith.constant 0 : index
    %17 = vector.load %arg3[%c0_5, %c0_6, %c0_7] : memref<9x1x128xf32, #tpu.memory_space<vmem>>, vector<1x1x128xf32>
    %18 = vector.shape_cast %17 : vector<1x1x128xf32> to vector<1x128xf32>
    %19 = vector.shape_cast %18 : vector<1x128xf32> to vector<1x1x128xf32>
    %20 = vector.broadcast %19 : vector<1x1x128xf32> to vector<16x16x128xf32>
    %21 = arith.mulf %20, %9 : vector<16x16x128xf32>
    %c1 = arith.constant 1 : index
    %c0_8 = arith.constant 0 : index
    %c0_9 = arith.constant 0 : index
    %22 = vector.load %arg3[%c1, %c0_8, %c0_9] : memref<9x1x128xf32, #tpu.memory_space<vmem>>, vector<1x1x128xf32>
    %23 = vector.shape_cast %22 : vector<1x1x128xf32> to vector<1x128xf32>
    %24 = vector.shape_cast %23 : vector<1x128xf32> to vector<1x1x128xf32>
    %25 = vector.broadcast %24 : vector<1x1x128xf32> to vector<16x16x128xf32>
    %26 = arith.mulf %25, %1 : vector<16x16x128xf32>
    %27 = arith.addf %21, %26 : vector<16x16x128xf32>
    %c2 = arith.constant 2 : index
    %c0_10 = arith.constant 0 : index
    %c0_11 = arith.constant 0 : index
    %28 = vector.load %arg3[%c2, %c0_10, %c0_11] : memref<9x1x128xf32, #tpu.memory_space<vmem>>, vector<1x1x128xf32>
    %29 = vector.shape_cast %28 : vector<1x1x128xf32> to vector<1x128xf32>
    %30 = vector.shape_cast %29 : vector<1x128xf32> to vector<1x1x128xf32>
    %31 = vector.broadcast %30 : vector<1x1x128xf32> to vector<16x16x128xf32>
    %32 = arith.mulf %31, %16 : vector<16x16x128xf32>
    %33 = arith.addf %27, %32 : vector<16x16x128xf32>
    %c3 = arith.constant 3 : index
    %c0_12 = arith.constant 0 : index
    %c0_13 = arith.constant 0 : index
    %34 = vector.load %arg3[%c3, %c0_12, %c0_13] : memref<9x1x128xf32, #tpu.memory_space<vmem>>, vector<1x1x128xf32>
    %35 = vector.shape_cast %34 : vector<1x1x128xf32> to vector<1x128xf32>
    %36 = vector.shape_cast %35 : vector<1x128xf32> to vector<1x1x128xf32>
    %37 = vector.broadcast %36 : vector<1x1x128xf32> to vector<16x16x128xf32>
    %38 = arith.mulf %37, %9 : vector<16x16x128xf32>
    %c4 = arith.constant 4 : index
    %c0_14 = arith.constant 0 : index
    %c0_15 = arith.constant 0 : index
    %39 = vector.load %arg3[%c4, %c0_14, %c0_15] : memref<9x1x128xf32, #tpu.memory_space<vmem>>, vector<1x1x128xf32>
    %40 = vector.shape_cast %39 : vector<1x1x128xf32> to vector<1x128xf32>
    %41 = vector.shape_cast %40 : vector<1x128xf32> to vector<1x1x128xf32>
    %42 = vector.broadcast %41 : vector<1x1x128xf32> to vector<16x16x128xf32>
    %43 = arith.mulf %42, %1 : vector<16x16x128xf32>
    %44 = arith.addf %38, %43 : vector<16x16x128xf32>
    %c5 = arith.constant 5 : index
    %c0_16 = arith.constant 0 : index
    %c0_17 = arith.constant 0 : index
    %45 = vector.load %arg3[%c5, %c0_16, %c0_17] : memref<9x1x128xf32, #tpu.memory_space<vmem>>, vector<1x1x128xf32>
    %46 = vector.shape_cast %45 : vector<1x1x128xf32> to vector<1x128xf32>
    %47 = vector.shape_cast %46 : vector<1x128xf32> to vector<1x1x128xf32>
    %48 = vector.broadcast %47 : vector<1x1x128xf32> to vector<16x16x128xf32>
    %49 = arith.mulf %48, %16 : vector<16x16x128xf32>
    %50 = arith.addf %44, %49 : vector<16x16x128xf32>
    %c6 = arith.constant 6 : index
    %c0_18 = arith.constant 0 : index
    %c0_19 = arith.constant 0 : index
    %51 = vector.load %arg3[%c6, %c0_18, %c0_19] : memref<9x1x128xf32, #tpu.memory_space<vmem>>, vector<1x1x128xf32>
    %52 = vector.shape_cast %51 : vector<1x1x128xf32> to vector<1x128xf32>
    %53 = vector.shape_cast %52 : vector<1x128xf32> to vector<1x1x128xf32>
    %54 = vector.broadcast %53 : vector<1x1x128xf32> to vector<16x16x128xf32>
    %55 = arith.mulf %54, %9 : vector<16x16x128xf32>
    %c7 = arith.constant 7 : index
    %c0_20 = arith.constant 0 : index
    %c0_21 = arith.constant 0 : index
    %56 = vector.load %arg3[%c7, %c0_20, %c0_21] : memref<9x1x128xf32, #tpu.memory_space<vmem>>, vector<1x1x128xf32>
    %57 = vector.shape_cast %56 : vector<1x1x128xf32> to vector<1x128xf32>
    %58 = vector.shape_cast %57 : vector<1x128xf32> to vector<1x1x128xf32>
    %59 = vector.broadcast %58 : vector<1x1x128xf32> to vector<16x16x128xf32>
    %60 = arith.mulf %59, %1 : vector<16x16x128xf32>
    %61 = arith.addf %55, %60 : vector<16x16x128xf32>
    %c8 = arith.constant 8 : index
    %c0_22 = arith.constant 0 : index
    %c0_23 = arith.constant 0 : index
    %62 = vector.load %arg3[%c8, %c0_22, %c0_23] : memref<9x1x128xf32, #tpu.memory_space<vmem>>, vector<1x1x128xf32>
    %63 = vector.shape_cast %62 : vector<1x1x128xf32> to vector<1x128xf32>
    %64 = vector.shape_cast %63 : vector<1x128xf32> to vector<1x1x128xf32>
    %65 = vector.broadcast %64 : vector<1x1x128xf32> to vector<16x16x128xf32>
    %66 = arith.mulf %65, %16 : vector<16x16x128xf32>
    %67 = arith.addf %61, %66 : vector<16x16x128xf32>
    %c0_24 = arith.constant 0 : index
    %c0_25 = arith.constant 0 : index
    %c0_26 = arith.constant 0 : index
    %68 = vector.load %arg4[%c0_24, %c0_25, %c0_26] : memref<1x1x128xf32, #tpu.memory_space<vmem>>, vector<1x1x128xf32>
    %69 = vector.broadcast %68 : vector<1x1x128xf32> to vector<16x16x128xf32>
    %70 = arith.addf %50, %69 : vector<16x16x128xf32>
    %cst_27 = arith.constant 0.000000e+00 : f32
    %71 = vector.broadcast %cst_27 : f32 to vector<1x16x128xf32>
    %72 = vector.extract_strided_slice %33 {offsets = [0, 0, 0], sizes = [15, 16, 128], strides = [1, 1, 1]} : vector<16x16x128xf32> to vector<15x16x128xf32>
    %73 = tpu.concatenate %71, %72 in 0 : vector<1x16x128xf32>, vector<15x16x128xf32> -> vector<16x16x128xf32>
    %74 = arith.addf %70, %73 : vector<16x16x128xf32>
    %75 = vector.extract_strided_slice %67 {offsets = [1, 0, 0], sizes = [15, 16, 128], strides = [1, 1, 1]} : vector<16x16x128xf32> to vector<15x16x128xf32>
    %76 = tpu.concatenate %75, %71 in 0 : vector<15x16x128xf32>, vector<1x16x128xf32> -> vector<16x16x128xf32>
    %77 = arith.addf %74, %76 : vector<16x16x128xf32>
    %c0_28 = arith.constant 0 : index
    %c0_29 = arith.constant 0 : index
    %c0_30 = arith.constant 0 : index
    %c0_31 = arith.constant 0 : index
    %78 = vector.load %arg5[%c0_28, %c0_29, %c0_30, %c0_31] : memref<1x16x16x128xf32, #tpu.memory_space<vmem>>, vector<1x16x16x128xf32>
    %79 = vector.shape_cast %78 : vector<1x16x16x128xf32> to vector<16x16x128xf32>
    %80 = vector.shape_cast %77 : vector<16x16x128xf32> to vector<1x16x16x128xf32>
    tpu.vector_store %arg5[%c0_28, %c0_29, %c0_30, %c0_31], %80 {strides = array<i32>} : memref<1x16x16x128xf32, #tpu.memory_space<vmem>>, vector<1x16x16x128xf32>,
    return
  }
  func.func @transform_0(%arg0: i32, %arg1: i32) -> (i32, i32, i32, i32) {
    %c0_i32 = arith.constant 0 : i32
    %c0_i32_0 = arith.constant 0 : i32
    %c0_i32_1 = arith.constant 0 : i32
    return %arg0, %c0_i32, %c0_i32_0, %arg1 : i32, i32, i32, i32
  }
  func.func @transform_1(%arg0: i32, %arg1: i32) -> (i32, i32, i32) {
    %c0_i32 = arith.constant 0 : i32
    %c0_i32_0 = arith.constant 0 : i32
    %c0_i32_1 = arith.constant 0 : i32
    return %c0_i32, %c0_i32_0, %arg1 : i32, i32, i32
  }
  func.func @transform_2(%arg0: i32, %arg1: i32) -> (i32, i32, i32) {
    %c0_i32 = arith.constant 0 : i32
    %c0_i32_0 = arith.constant 0 : i32
    %c0_i32_1 = arith.constant 0 : i32
    return %c0_i32, %c0_i32_0, %arg1 : i32, i32, i32
  }
  func.func @transform_3(%arg0: i32, %arg1: i32) -> (i32, i32, i32, i32) {
    %c0_i32 = arith.constant 0 : i32
    %c0_i32_0 = arith.constant 0 : i32
    %c0_i32_1 = arith.constant 0 : i32
    return %arg0, %c0_i32, %c0_i32_0, %arg1 : i32, i32, i32, i32
  }
}

</mosaic_0001>

<llo_original>
// kernel: tpu_custom_call.1
$region0: #{tpu_custom_call.1}
  #allocation0 [shape = 'u32[]', space=smem, size = 0x4, offset = 0x4, fixed_abs, tag = 'smem constant byte address 0x4 - core index']
  #allocation1 [shape = 'u32[144,128]{1,0:T(1,128)}', space=vmem, size = 0x12000, scoped, tag = 'internal scratch']
  %s0 = inlined_call_operand.hbm [shape: f32[2,16,16,128], index: 0, kind: input, shape index: {}]
  %s1 = inlined_call_operand.hbm [shape: f32[9,1,128], index: 1, kind: input, shape index: {}]
  %s2 = inlined_call_operand.vmem [shape: f32[1,1,128], index: 2, kind: input, shape index: {}]
  %s3 = inlined_call_operand.hbm [shape: f32[2,16,16,128], index: 3, kind: output, shape index: {}]
  %s4 = sld [smem:[#allocation0]]
  $region53: #{tpu_custom_call.1} parent=0
    _
  %s6 = ssub.s32 1, %s4
  %s7 = scalar_select 0, %s6, %s4
  $region1: #{tpu_custom_call.1} parent=0
    #allocation2 [shape = 'u8[262144]{0}', space=vmem, size = 0x40000, scoped, tag = 'input window, operand 0']
    #allocation3 [shape = 's32[2]{0}', space=sflag, size = 0x8, scoped, tag = 'scoped memory for tpu_custom_call.1']
    #allocation4 [shape = 's32[2]{0}', space=sflag, size = 0x8, scoped, tag = 'scoped memory for tpu_custom_call.1']
    #allocation5 [shape = 'u8[4608]{0}', space=vmem, size = 0x1400, scoped, tag = 'input window, operand 1, single buffered']
    #allocation6 [shape = 's32[1]{0}', space=sflag, size = 0x4, scoped, tag = 'scoped memory for tpu_custom_call.1']
    #allocation7 [shape = 'u8[262144]{0}', space=vmem, size = 0x40000, scoped, tag = 'output window, operand 0']
    %8 = vsyncpa [#allocation3], 0
    %s9 = scalar_lea.sflag [#allocation3], 1
    %10 = vsyncpa %s9, 0
    %11 = vsyncpa [#allocation6], 0
    %12 = vsyncpa [#allocation4], 0
    %s13 = scalar_lea.sflag [#allocation4], 1
    %14 = vsyncpa %s13, 0
    loop: start=0, step=1, limit=4
    $region2: #{tpu_custom_call.1} parent=1 // loop_pre_header
      _
    $region3: #{tpu_custom_call.1} parent=1 // loop_header
      %s16 = sphi 0, %s20
      %p17 = scmp.ge.s32.totalorder %s16, 4
      %s23 = sphi 0, %s35
      %s24 = sphi 0, %s31
      %s25 = sphi 0, %s23
      %s26 = sphi 0, %s24
      %s27 = sphi 0, %s25
      %s28 = sphi 0, %s26
      %s40 = sphi 0, %s42
      %s43 = sphi 0, %s40
      %s44 = sphi 0, %s43
      %s60 = sphi 0, %s44
      %s66 = sphi 0, %s68
      %s69 = sphi 0, %s66
      %s70 = sphi 0, %s69
      %s86 = sphi 0, %s70
      %s92 = sphi 0, %s94
      %s95 = sphi 0, %s92
      %s96 = sphi 0, %s95
      %s112 = sphi 0, %s96
      %s120 = sphi 0, %s122
      %s123 = sphi 0, %s120
      %s124 = sphi 0, %s123
      %s140 = sphi 0, %s124
    $region4: #{tpu_custom_call.1} parent=1 // loop_header_branch
      %19 = sbr.rel (%p17) target = $region8
    $region5: #{tpu_custom_call.1} parent=1 // loop_body
      %s21 = ssub.s32 %s16, 1
      %s22 = ssub.s32 %s16, 2
      %s29 = sadd.s32 1, %s24
      %p30 = scmp.ge.s32.totalorder %s29, 1
      %s31 = scalar_select %p30, 0, %s29
      %s32 = sadd.s32 1, %s23
      %s33 = scalar_select %p30, %s32, %s23
      %p34 = scmp.ge.s32.totalorder %s33, 2
      %s35 = scalar_select %p34, 0, %s33
      %s36 = ssub.s32 %s23, %s35
      %s37 = ssub.s32 %s24, %s31
      %s38 = sor.u32 %s36, %s37
      %p39 = scmp.eq.s32.totalorder %s38, 0
      %s41 = sadd.s32 %s40, 1
      %s42 = scalar_select %p39, %s40, %s41
      %p45 = pneg %p39
      %p46 = scmp.eq.s32.totalorder %s16, 1
      %p47 = por %p45, %p46
      %p48 = scmp.ne.s32.totalorder %s40, %s43
      %p49 = scmp.eq.s32.totalorder %s16, 0
      %p50 = por %p48, %p49
      %p51 = scmp.ne.s32.totalorder %s40, %s43
      %p52 = scmp.eq.s32.totalorder %s21, 1
      %p53 = por %p51, %p52
      %p54 = scmp.ne.s32.totalorder %s43, %s44
      %p55 = scmp.eq.s32.totalorder %s21, 0
      %p56 = por %p54, %p55
      %p57 = scmp.ne.s32.totalorder %s43, %s44
      %p58 = scmp.eq.s32.totalorder %s22, 1
      %p59 = por %p57, %p58
      %p61 = scmp.ne.s32.totalorder %s44, %s60
      %p62 = scmp.eq.s32.totalorder %s22, 0
      %p63 = por %p61, %p62
      %s64 = ssub.s32 %s24, %s31
      %p65 = scmp.eq.s32.totalorder %s64, 0
      %s67 = sadd.s32 %s66, 1
      %s68 = scalar_select %p65, %s66, %s67
      %p71 = pneg %p65
      %p72 = scmp.eq.s32.totalorder %s16, 1
      %p73 = por %p71, %p72
      %p74 = scmp.ne.s32.totalorder %s66, %s69
      %p75 = scmp.eq.s32.totalorder %s16, 0
      %p76 = por %p74, %p75
      %p77 = scmp.ne.s32.totalorder %s66, %s69
      %p78 = scmp.eq.s32.totalorder %s21, 1
      %p79 = por %p77, %p78
      %p80 = scmp.ne.s32.totalorder %s69, %s70
      %p81 = scmp.eq.s32.totalorder %s21, 0
      %p82 = por %p80, %p81
      %p83 = scmp.ne.s32.totalorder %s69, %s70
      %p84 = scmp.eq.s32.totalorder %s22, 1
      %p85 = por %p83, %p84
      %p87 = scmp.ne.s32.totalorder %s70, %s86
      %p88 = scmp.eq.s32.totalorder %s22, 0
      %p89 = por %p87, %p88
      %s90 = ssub.s32 %s24, %s31
      %p91 = scmp.eq.s32.totalorder %s90, 0
      %s93 = sadd.s32 %s92, 1
      %s94 = scalar_select %p91, %s92, %s93
      %p97 = pneg %p91
      %p98 = scmp.eq.s32.totalorder %s16, 1
      %p99 = por %p97, %p98
      %p100 = scmp.ne.s32.totalorder %s92, %s95
      %p101 = scmp.eq.s32.totalorder %s16, 0
      %p102 = por %p100, %p101
      %p103 = scmp.ne.s32.totalorder %s92, %s95
      %p104 = scmp.eq.s32.totalorder %s21, 1
      %p105 = por %p103, %p104
      %p106 = scmp.ne.s32.totalorder %s95, %s96
      %p107 = scmp.eq.s32.totalorder %s21, 0
      %p108 = por %p106, %p107
      %p109 = scmp.ne.s32.totalorder %s95, %s96
      %p110 = scmp.eq.s32.totalorder %s22, 1
      %p111 = por %p109, %p110
      %p113 = scmp.ne.s32.totalorder %s96, %s112
      %p114 = scmp.eq.s32.totalorder %s22, 0
      %p115 = por %p113, %p114
      %s116 = ssub.s32 %s23, %s35
      %s117 = ssub.s32 %s24, %s31
      %s118 = sor.u32 %s116, %s117
      %p119 = scmp.eq.s32.totalorder %s118, 0
      %s121 = sadd.s32 %s120, 1
      %s122 = scalar_select %p119, %s120, %s121
      %p125 = pneg %p119
      %p126 = scmp.eq.s32.totalorder %s16, 1
      %p127 = por %p125, %p126
      %p128 = scmp.ne.s32.totalorder %s120, %s123
      %p129 = scmp.eq.s32.totalorder %s16, 0
      %p130 = por %p128, %p129
      %p131 = scmp.ne.s32.totalorder %s120, %s123
      %p132 = scmp.eq.s32.totalorder %s21, 1
      %p133 = por %p131, %p132
      %p134 = scmp.ne.s32.totalorder %s123, %s124
      %p135 = scmp.eq.s32.totalorder %s21, 0
      %p136 = por %p134, %p135
      %p137 = scmp.ne.s32.totalorder %s123, %s124
      %p138 = scmp.eq.s32.totalorder %s22, 1
      %p139 = por %p137, %p138
      %p141 = scmp.ne.s32.totalorder %s124, %s140
      %p142 = scmp.eq.s32.totalorder %s22, 0
      %p143 = por %p141, %p142
      %p144 = scmp.le.s32.totalorder 1, %s16
      %p145 = scmp.lt.s32.totalorder %s16, 3
      %p146 = pnand %p144, %p145
      %p147 = pneg %p146
      // Predicated region
      $region9: #{tpu_custom_call.1} parent=5 // pred_check
        _
      $region10: #{tpu_custom_call.1} parent=5 // pred_check_branch
        %149 = sbr.rel (%p146) target = $region12
      $region11: #{tpu_custom_call.1} parent=5 // pred_region
        %s150 = ssub.s32 %s16, 1
        // Predicated region
        $region13: #{tpu_custom_call.1} parent=11 // pred_check
          %p151 = pneg %p82
        $region14: #{tpu_custom_call.1} parent=11 // pred_check_branch
          %153 = sbr.rel (%p151) target = $region16
        $region15: #{tpu_custom_call.1} parent=11 // pred_region
          %s155 = ssub.s32 144, 144
          %156 = vsyncadd [#allocation6], %s155
          %s157 = smul.addr %s26, 16
          %s158 = scalar_lea.hbm %s1, %s157
          %s159 = sshll.u32 [#allocation5], 4
          %s160 = int_to_ptr.vmem [resolvable:$true] %s159
          %165 = dma.hbm_to_vmem [thread:$0]  %s158, 144, %s160, [#allocation6], 16, 16, 1
        $region16: #{tpu_custom_call.1} parent=11 // pred_fallthru
          _
        // Predicated region
        $region17: #{tpu_custom_call.1} parent=11 // pred_check
          %p166 = pneg %p108
        $region18: #{tpu_custom_call.1} parent=11 // pred_check_branch
          %168 = sbr.rel (%p166) target = $region20
        $region19: #{tpu_custom_call.1} parent=11 // pred_region
          %p169 = scmp.lt.s32.totalorder %s26, 0
          %s170 = scalar_select %p169, %s26, 0
          %s171 = scalar_lea.vmem %s2, %s170
        $region20: #{tpu_custom_call.1} parent=11 // pred_fallthru
          _
      $region12: #{tpu_custom_call.1} parent=5 // pred_fallthru
        _
      %p172 = scmp.lt.s32.totalorder %s16, 2
      // Predicated region
      $region21: #{tpu_custom_call.1} parent=5 // pred_check
        %p173 = pneg %p172
      $region22: #{tpu_custom_call.1} parent=5 // pred_check_branch
        %175 = sbr.rel (%p173) target = $region24
      $region23: #{tpu_custom_call.1} parent=5 // pred_region
        // Predicated region
        $region25: #{tpu_custom_call.1} parent=23 // pred_check
          %p176 = pneg %p50
        $region26: #{tpu_custom_call.1} parent=23 // pred_check_branch
          %178 = sbr.rel (%p176) target = $region28
        $region27: #{tpu_custom_call.1} parent=23 // pred_region
          %s179 = sand.u32 %s40, 1
          %s180 = scalar_lea.sflag [#allocation3], %s179
          %s181 = sand.u32 %s40, 1
          %s182 = smul.addr %s181, 256
          %s183 = scalar_lea.vmem [#allocation2], %s182
          %s185 = ssub.s32 4096, 4096
          %186 = vsyncadd %s180, %s185
          %s187 = smul.addr %s23, 32
          %s188 = sadd.s32 %s24, %s187
          %s189 = smul.addr %s188, 128
          %s190 = scalar_lea.hbm %s0, %s189
          %s191 = sshll.u32 %s183, 4
          %s192 = int_to_ptr.vmem [resolvable:$true] %s191
          %197 = dma.hbm_to_vmem [thread:$0]  %s190, 4096, %s192, %s180, 128, 128, 8
        $region28: #{tpu_custom_call.1} parent=23 // pred_fallthru
          _
      $region24: #{tpu_custom_call.1} parent=5 // pred_fallthru
        _
      %p198 = scmp.le.s32.totalorder 1, %s16
      %p199 = scmp.lt.s32.totalorder %s16, 3
      %p200 = pnand %p198, %p199
      %p201 = pneg %p200
      // Predicated region
      $region29: #{tpu_custom_call.1} parent=5 // pred_check
        _
      $region30: #{tpu_custom_call.1} parent=5 // pred_check_branch
        %203 = sbr.rel (%p200) target = $region32
      $region31: #{tpu_custom_call.1} parent=5 // pred_region
        %s204 = ssub.s32 %s16, 1
        %s205 = sand.u32 %s43, 1
        %s206 = scalar_lea.sflag [#allocation3], %s205
        %s207 = sand.u32 %s43, 1
        %s208 = smul.addr %s207, 256
        %s209 = scalar_lea.vmem [#allocation2], %s208
        // Predicated region
        $region33: #{tpu_custom_call.1} parent=31 // pred_check
          %p210 = pneg %p56
        $region34: #{tpu_custom_call.1} parent=31 // pred_check_branch
          %212 = sbr.rel (%p210) target = $region36
        $region35: #{tpu_custom_call.1} parent=31 // pred_region
          %213 = dma.done %s206, 4096
        $region36: #{tpu_custom_call.1} parent=31 // pred_fallthru
          _
        // Predicated region
        $region37: #{tpu_custom_call.1} parent=31 // pred_check
          %p214 = pneg %p82
        $region38: #{tpu_custom_call.1} parent=31 // pred_check_branch
          %216 = sbr.rel (%p214) target = $region40
        $region39: #{tpu_custom_call.1} parent=31 // pred_region
          %217 = dma.done [#allocation6], 144
        $region40: #{tpu_custom_call.1} parent=31 // pred_fallthru
          _
        %s218 = sand.u32 %s43, 1
        %s219 = scalar_lea.sflag [#allocation3], %s218
        %s220 = sand.u32 %s43, 1
        %s221 = smul.addr %s220, 256
        %s222 = scalar_lea.vmem [#allocation2], %s221
        %p223 = pneg %p56
        %p224 = pneg %p53
        %p225 = pneg %p82
        %p226 = pneg %p79
        %p227 = scmp.lt.s32.totalorder %s26, 0
        %s228 = scalar_select %p227, %s26, 0
        %s229 = scalar_lea.vmem %s2, %s228
        %p230 = pneg %p108
        %p231 = pneg %p105
        %p232 = pneg %p136
        %p233 = pneg %p133
        %s234 = sand.u32 %s123, 1
        %s235 = scalar_lea.sflag [#allocation4], %s234
        %s236 = sand.u32 %s123, 1
        %s237 = smul.addr %s236, 256
        %s238 = scalar_lea.vmem [#allocation7], %s237
        %p239 = scmp.lt.s32.totalorder %s26, 0
        %s240 = scalar_select %p239, %s26, 0
        %s241 = scalar_lea.vmem %s2, %s240
        %v242 = vld [vmem:[%s209] sm:$0xff]
        %v243 = vld [vmem:[%s209 + $0x8] sm:$0xff]
        %v244 = vld [vmem:[%s209 + $0x10] sm:$0xff]
        %v245 = vld [vmem:[%s209 + $0x18] sm:$0xff]
        %v246 = vld [vmem:[%s209 + $0x20] sm:$0xff]
        %v247 = vld [vmem:[%s209 + $0x28] sm:$0xff]
        %v248 = vld [vmem:[%s209 + $0x30] sm:$0xff]
        %v249 = vld [vmem:[%s209 + $0x38] sm:$0xff]
        %v250 = vld [vmem:[%s209 + $0x40] sm:$0xff]
        %v251 = vld [vmem:[%s209 + $0x48] sm:$0xff]
        %v252 = vld [vmem:[%s209 + $0x50] sm:$0xff]
        %v253 = vld [vmem:[%s209 + $0x58] sm:$0xff]
        %v254 = vld [vmem:[%s209 + $0x60] sm:$0xff]
        %v255 = vld [vmem:[%s209 + $0x68] sm:$0xff]
        %v256 = vld [vmem:[%s209 + $0x70] sm:$0xff]
        %v257 = vld [vmem:[%s209 + $0x78] sm:$0xff]
        %v258 = vld [vmem:[%s209 + $0x80] sm:$0xff]
        %v259 = vld [vmem:[%s209 + $0x88] sm:$0xff]
        %v260 = vld [vmem:[%s209 + $0x90] sm:$0xff]
        %v261 = vld [vmem:[%s209 + $0x98] sm:$0xff]
        %v262 = vld [vmem:[%s209 + $0xa0] sm:$0xff]
        %v263 = vld [vmem:[%s209 + $0xa8] sm:$0xff]
        %v264 = vld [vmem:[%s209 + $0xb0] sm:$0xff]
        %v265 = vld [vmem:[%s209 + $0xb8] sm:$0xff]
        %v266 = vld [vmem:[%s209 + $0xc0] sm:$0xff]
        %v267 = vld [vmem:[%s209 + $0xc8] sm:$0xff]
        %v268 = vld [vmem:[%s209 + $0xd0] sm:$0xff]
        %v269 = vld [vmem:[%s209 + $0xd8] sm:$0xff]
        %v270 = vld [vmem:[%s209 + $0xe0] sm:$0xff]
        %v271 = vld [vmem:[%s209 + $0xe8] sm:$0xff]
        %v272 = vld [vmem:[%s209 + $0xf0] sm:$0xff]
        %v273 = vld [vmem:[%s209 + $0xf8] sm:$0xff]
        %v274 = vlaneseq
        %v275 = vshrl.u32 %v274, 7
        %v276 = vadd.s32 %v275, 8
        %vm277 = vcmp.ge.s32.totalorder %v275, 1
        %vm278 = vcmp.ge.s32.totalorder %v276, 1
        %v279 = vrot.slane %v242, 7
        %v280 = vrot.slane %v244, 7
        %v281 = vrot.slane %v246, 7
        %v282 = vrot.slane %v248, 7
        %v283 = vrot.slane %v250, 7
        %v284 = vrot.slane %v252, 7
        %v285 = vrot.slane %v254, 7
        %v286 = vrot.slane %v256, 7
        %v287 = vrot.slane %v258, 7
        %v288 = vrot.slane %v260, 7
        %v289 = vrot.slane %v262, 7
        %v290 = vrot.slane %v264, 7
        %v291 = vrot.slane %v266, 7
        %v292 = vrot.slane %v268, 7
        %v293 = vrot.slane %v270, 7
        %v294 = vrot.slane %v272, 7
        %v295 = vrot.slane %v243, 7
        %v296 = vrot.slane %v245, 7
        %v297 = vrot.slane %v247, 7
        %v298 = vrot.slane %v249, 7
        %v299 = vrot.slane %v251, 7
        %v300 = vrot.slane %v253, 7
        %v301 = vrot.slane %v255, 7
        %v302 = vrot.slane %v257, 7
        %v303 = vrot.slane %v259, 7
        %v304 = vrot.slane %v261, 7
        %v305 = vrot.slane %v263, 7
        %v306 = vrot.slane %v265, 7
        %v307 = vrot.slane %v267, 7
        %v308 = vrot.slane %v269, 7
        %v309 = vrot.slane %v271, 7
        %v310 = vrot.slane %v273, 7
        %vm311 = vcmp.lt.s32.totalorder %v275, 1
        %v312 = vsel %vm311, %v279, %v295
        %v313 = vsel %vm311, %v280, %v296
        %v314 = vsel %vm311, %v281, %v297
        %v315 = vsel %vm311, %v282, %v298
        %v316 = vsel %vm311, %v283, %v299
        %v317 = vsel %vm311, %v284, %v300
        %v318 = vsel %vm311, %v285, %v301
        %v319 = vsel %vm311, %v286, %v302
        %v320 = vsel %vm311, %v287, %v303
        %v321 = vsel %vm311, %v288, %v304
        %v322 = vsel %vm311, %v289, %v305
        %v323 = vsel %vm311, %v290, %v306
        %v324 = vsel %vm311, %v291, %v307
        %v325 = vsel %vm311, %v292, %v308
        %v326 = vsel %vm311, %v293, %v309
        %v327 = vsel %vm311, %v294, %v310
        %v328 = vsel %vm311, %v295, %v279
        %v329 = vsel %vm311, %v296, %v280
        %v330 = vsel %vm311, %v297, %v281
        %v331 = vsel %vm311, %v298, %v282
        %v332 = vsel %vm311, %v299, %v283
        %v333 = vsel %vm311, %v300, %v284
        %v334 = vsel %vm311, %v301, %v285
        %v335 = vsel %vm311, %v302, %v286
        %v336 = vsel %vm311, %v303, %v287
        %v337 = vsel %vm311, %v304, %v288
        %v338 = vsel %vm311, %v305, %v289
        %v339 = vsel %vm311, %v306, %v290
        %v340 = vsel %vm311, %v307, %v291
        %v341 = vsel %vm311, %v308, %v292
        %v342 = vsel %vm311, %v309, %v293
        %v343 = vsel %vm311, %v310, %v294
        %v344 = vsel %vm277, 1, 0
        %v345 = vsel %vm278, 1, 0
        %vm346 = vcmp.eq.s32.totalorder %v344, 1
        %vm347 = vcmp.eq.s32.totalorder %v345, 1
        %v348 = vsel %vm346, %v328, 0.0
        %v349 = vsel %vm347, %v312, 0.0
        %v350 = vsel %vm346, %v329, 0.0
        %v351 = vsel %vm347, %v313, 0.0
        %v352 = vsel %vm346, %v330, 0.0
        %v353 = vsel %vm347, %v314, 0.0
        %v354 = vsel %vm346, %v331, 0.0
        %v355 = vsel %vm347, %v315, 0.0
        %v356 = vsel %vm346, %v332, 0.0
        %v357 = vsel %vm347, %v316, 0.0
        %v358 = vsel %vm346, %v333, 0.0
        %v359 = vsel %vm347, %v317, 0.0
        %v360 = vsel %vm346, %v334, 0.0
        %v361 = vsel %vm347, %v318, 0.0
        %v362 = vsel %vm346, %v335, 0.0
        %v363 = vsel %vm347, %v319, 0.0
        %v364 = vsel %vm346, %v336, 0.0
        %v365 = vsel %vm347, %v320, 0.0
        %v366 = vsel %vm346, %v337, 0.0
        %v367 = vsel %vm347, %v321, 0.0
        %v368 = vsel %vm346, %v338, 0.0
        %v369 = vsel %vm347, %v322, 0.0
        %v370 = vsel %vm346, %v339, 0.0
        %v371 = vsel %vm347, %v323, 0.0
        %v372 = vsel %vm346, %v340, 0.0
        %v373 = vsel %vm347, %v324, 0.0
        %v374 = vsel %vm346, %v341, 0.0
        %v375 = vsel %vm347, %v325, 0.0
        %v376 = vsel %vm346, %v342, 0.0
        %v377 = vsel %vm347, %v326, 0.0
        %v378 = vsel %vm346, %v343, 0.0
        %v379 = vsel %vm347, %v327, 0.0
        %vm380 = vcmp.le.s32.totalorder %v275, 14
        %vm381 = vcmp.le.s32.totalorder %v276, 14
        %v382 = vrot.slane %v242, 1
        %v383 = vrot.slane %v244, 1
        %v384 = vrot.slane %v246, 1
        %v385 = vrot.slane %v248, 1
        %v386 = vrot.slane %v250, 1
        %v387 = vrot.slane %v252, 1
        %v388 = vrot.slane %v254, 1
        %v389 = vrot.slane %v256, 1
        %v390 = vrot.slane %v258, 1
        %v391 = vrot.slane %v260, 1
        %v392 = vrot.slane %v262, 1
        %v393 = vrot.slane %v264, 1
        %v394 = vrot.slane %v266, 1
        %v395 = vrot.slane %v268, 1
        %v396 = vrot.slane %v270, 1
        %v397 = vrot.slane %v272, 1
        %v398 = vrot.slane %v243, 1
        %v399 = vrot.slane %v245, 1
        %v400 = vrot.slane %v247, 1
        %v401 = vrot.slane %v249, 1
        %v402 = vrot.slane %v251, 1
        %v403 = vrot.slane %v253, 1
        %v404 = vrot.slane %v255, 1
        %v405 = vrot.slane %v257, 1
        %v406 = vrot.slane %v259, 1
        %v407 = vrot.slane %v261, 1
        %v408 = vrot.slane %v263, 1
        %v409 = vrot.slane %v265, 1
        %v410 = vrot.slane %v267, 1
        %v411 = vrot.slane %v269, 1
        %v412 = vrot.slane %v271, 1
        %v413 = vrot.slane %v273, 1
        %vm414 = vcmp.lt.s32.totalorder %v275, 7
        %v415 = vsel %vm414, %v382, %v398
        %v416 = vsel %vm414, %v383, %v399
        %v417 = vsel %vm414, %v384, %v400
        %v418 = vsel %vm414, %v385, %v401
        %v419 = vsel %vm414, %v386, %v402
        %v420 = vsel %vm414, %v387, %v403
        %v421 = vsel %vm414, %v388, %v404
        %v422 = vsel %vm414, %v389, %v405
        %v423 = vsel %vm414, %v390, %v406
        %v424 = vsel %vm414, %v391, %v407
        %v425 = vsel %vm414, %v392, %v408
        %v426 = vsel %vm414, %v393, %v409
        %v427 = vsel %vm414, %v394, %v410
        %v428 = vsel %vm414, %v395, %v411
        %v429 = vsel %vm414, %v396, %v412
        %v430 = vsel %vm414, %v397, %v413
        %v431 = vsel %vm414, %v398, %v382
        %v432 = vsel %vm414, %v399, %v383
        %v433 = vsel %vm414, %v400, %v384
        %v434 = vsel %vm414, %v401, %v385
        %v435 = vsel %vm414, %v402, %v386
        %v436 = vsel %vm414, %v403, %v387
        %v437 = vsel %vm414, %v404, %v388
        %v438 = vsel %vm414, %v405, %v389
        %v439 = vsel %vm414, %v406, %v390
        %v440 = vsel %vm414, %v407, %v391
        %v441 = vsel %vm414, %v408, %v392
        %v442 = vsel %vm414, %v409, %v393
        %v443 = vsel %vm414, %v410, %v394
        %v444 = vsel %vm414, %v411, %v395
        %v445 = vsel %vm414, %v412, %v396
        %v446 = vsel %vm414, %v413, %v397
        %v447 = vsel %vm380, 1, 0
        %v448 = vsel %vm381, 1, 0
        %vm449 = vcmp.eq.s32.totalorder %v447, 1
        %vm450 = vcmp.eq.s32.totalorder %v448, 1
        %v451 = vsel %vm449, %v415, 0.0
        %v452 = vsel %vm450, %v431, 0.0
        %v453 = vsel %vm449, %v416, 0.0
        %v454 = vsel %vm450, %v432, 0.0
        %v455 = vsel %vm449, %v417, 0.0
        %v456 = vsel %vm450, %v433, 0.0
        %v457 = vsel %vm449, %v418, 0.0
        %v458 = vsel %vm450, %v434, 0.0
        %v459 = vsel %vm449, %v419, 0.0
        %v460 = vsel %vm450, %v435, 0.0
        %v461 = vsel %vm449, %v420, 0.0
        %v462 = vsel %vm450, %v436, 0.0
        %v463 = vsel %vm449, %v421, 0.0
        %v464 = vsel %vm450, %v437, 0.0
        %v465 = vsel %vm449, %v422, 0.0
        %v466 = vsel %vm450, %v438, 0.0
        %v467 = vsel %vm449, %v423, 0.0
        %v468 = vsel %vm450, %v439, 0.0
        %v469 = vsel %vm449, %v424, 0.0
        %v470 = vsel %vm450, %v440, 0.0
        %v471 = vsel %vm449, %v425, 0.0
        %v472 = vsel %vm450, %v441, 0.0
        %v473 = vsel %vm449, %v426, 0.0
        %v474 = vsel %vm450, %v442, 0.0
        %v475 = vsel %vm449, %v427, 0.0
        %v476 = vsel %vm450, %v443, 0.0
        %v477 = vsel %vm449, %v428, 0.0
        %v478 = vsel %vm450, %v444, 0.0
        %v479 = vsel %vm449, %v429, 0.0
        %v480 = vsel %vm450, %v445, 0.0
        %v481 = vsel %vm449, %v430, 0.0
        %v482 = vsel %vm450, %v446, 0.0
        %v483 = vld [vmem:[#allocation5] sm:$0x1]
        %v485 = vlaneseq
        %v486 = vshrl.u32 %v485, 7
        %v487 = vsub.s32 0, %v486
        %v488 = vrot.slane %v483, %v487
        %v490 = vmul.f32 %v488, %v348
        %v491 = vmul.f32 %v488, %v349
        %v492 = vmul.f32 %v488, %v350
        %v493 = vmul.f32 %v488, %v351
        %v494 = vmul.f32 %v488, %v352
        %v495 = vmul.f32 %v488, %v353
        %v496 = vmul.f32 %v488, %v354
        %v497 = vmul.f32 %v488, %v355
        %v498 = vmul.f32 %v488, %v356
        %v499 = vmul.f32 %v488, %v357
        %v500 = vmul.f32 %v488, %v358
        %v501 = vmul.f32 %v488, %v359
        %v502 = vmul.f32 %v488, %v360
        %v503 = vmul.f32 %v488, %v361
        %v504 = vmul.f32 %v488, %v362
        %v505 = vmul.f32 %v488, %v363
        %v506 = vmul.f32 %v488, %v364
        %v507 = vmul.f32 %v488, %v365
        %v508 = vmul.f32 %v488, %v366
        %v509 = vmul.f32 %v488, %v367
        %v510 = vmul.f32 %v488, %v368
        %v511 = vmul.f32 %v488, %v369
        %v512 = vmul.f32 %v488, %v370
        %v513 = vmul.f32 %v488, %v371
        %v514 = vmul.f32 %v488, %v372
        %v515 = vmul.f32 %v488, %v373
        %v516 = vmul.f32 %v488, %v374
        %v517 = vmul.f32 %v488, %v375
        %v518 = vmul.f32 %v488, %v376
        %v519 = vmul.f32 %v488, %v377
        %s520 = scalar_lea.vmem [#allocation5], 1
        %v521 = vld [vmem:[%s520] sm:$0x1]
        %v523 = vlaneseq
        %v524 = vshrl.u32 %v523, 7
        %v525 = vsub.s32 0, %v524
        %v526 = vrot.slane %v521, %v525
        %v528 = vmul.f32 %v526, %v242
        %v529 = vmul.f32 %v526, %v243
        %v530 = vmul.f32 %v526, %v244
        %v531 = vmul.f32 %v526, %v245
        %v532 = vmul.f32 %v526, %v246
        %v533 = vmul.f32 %v526, %v247
        %v534 = vmul.f32 %v526, %v248
        %v535 = vmul.f32 %v526, %v249
        %v536 = vmul.f32 %v526, %v250
        %v537 = vmul.f32 %v526, %v251
        %v538 = vmul.f32 %v526, %v252
        %v539 = vmul.f32 %v526, %v253
        %v540 = vmul.f32 %v526, %v254
        %v541 = vmul.f32 %v526, %v255
        %v542 = vmul.f32 %v526, %v256
        %v543 = vmul.f32 %v526, %v257
        %v544 = vmul.f32 %v526, %v258
        %v545 = vmul.f32 %v526, %v259
        %v546 = vmul.f32 %v526, %v260
        %v547 = vmul.f32 %v526, %v261
        %v548 = vmul.f32 %v526, %v262
        %v549 = vmul.f32 %v526, %v263
        %v550 = vmul.f32 %v526, %v264
        %v551 = vmul.f32 %v526, %v265
        %v552 = vmul.f32 %v526, %v266
        %v553 = vmul.f32 %v526, %v267
        %v554 = vmul.f32 %v526, %v268
        %v555 = vmul.f32 %v526, %v269
        %v556 = vmul.f32 %v526, %v270
        %v557 = vmul.f32 %v526, %v271
        %v558 = vadd.f32 %v490, %v528
        %v559 = vadd.f32 %v491, %v529
        %v560 = vadd.f32 %v492, %v530
        %v561 = vadd.f32 %v493, %v531
        %v562 = vadd.f32 %v494, %v532
        %v563 = vadd.f32 %v495, %v533
        %v564 = vadd.f32 %v496, %v534
        %v565 = vadd.f32 %v497, %v535
        %v566 = vadd.f32 %v498, %v536
        %v567 = vadd.f32 %v499, %v537
        %v568 = vadd.f32 %v500, %v538
        %v569 = vadd.f32 %v501, %v539
        %v570 = vadd.f32 %v502, %v540
        %v571 = vadd.f32 %v503, %v541
        %v572 = vadd.f32 %v504, %v542
        %v573 = vadd.f32 %v505, %v543
        %v574 = vadd.f32 %v506, %v544
        %v575 = vadd.f32 %v507, %v545
        %v576 = vadd.f32 %v508, %v546
        %v577 = vadd.f32 %v509, %v547
        %v578 = vadd.f32 %v510, %v548
        %v579 = vadd.f32 %v511, %v549
        %v580 = vadd.f32 %v512, %v550
        %v581 = vadd.f32 %v513, %v551
        %v582 = vadd.f32 %v514, %v552
        %v583 = vadd.f32 %v515, %v553
        %v584 = vadd.f32 %v516, %v554
        %v585 = vadd.f32 %v517, %v555
        %v586 = vadd.f32 %v518, %v556
        %v587 = vadd.f32 %v519, %v557
        %s588 = scalar_lea.vmem [#allocation5], 2
        %v589 = vld [vmem:[%s588] sm:$0x1]
        %v591 = vlaneseq
        %v592 = vshrl.u32 %v591, 7
        %v593 = vsub.s32 0, %v592
        %v594 = vrot.slane %v589, %v593
        %v596 = vmul.f32 %v594, %v451
        %v597 = vmul.f32 %v594, %v452
        %v598 = vmul.f32 %v594, %v453
        %v599 = vmul.f32 %v594, %v454
        %v600 = vmul.f32 %v594, %v455
        %v601 = vmul.f32 %v594, %v456
        %v602 = vmul.f32 %v594, %v457
        %v603 = vmul.f32 %v594, %v458
        %v604 = vmul.f32 %v594, %v459
        %v605 = vmul.f32 %v594, %v460
        %v606 = vmul.f32 %v594, %v461
        %v607 = vmul.f32 %v594, %v462
        %v608 = vmul.f32 %v594, %v463
        %v609 = vmul.f32 %v594, %v464
        %v610 = vmul.f32 %v594, %v465
        %v611 = vmul.f32 %v594, %v466
        %v612 = vmul.f32 %v594, %v467
        %v613 = vmul.f32 %v594, %v468
        %v614 = vmul.f32 %v594, %v469
        %v615 = vmul.f32 %v594, %v470
        %v616 = vmul.f32 %v594, %v471
        %v617 = vmul.f32 %v594, %v472
        %v618 = vmul.f32 %v594, %v473
        %v619 = vmul.f32 %v594, %v474
        %v620 = vmul.f32 %v594, %v475
        %v621 = vmul.f32 %v594, %v476
        %v622 = vmul.f32 %v594, %v477
        %v623 = vmul.f32 %v594, %v478
        %v624 = vmul.f32 %v594, %v479
        %v625 = vmul.f32 %v594, %v480
        %v626 = vadd.f32 %v558, %v596
        %v627 = vadd.f32 %v559, %v597
        %v628 = vadd.f32 %v560, %v598
        %v629 = vadd.f32 %v561, %v599
        %v630 = vadd.f32 %v562, %v600
        %v631 = vadd.f32 %v563, %v601
        %v632 = vadd.f32 %v564, %v602
        %v633 = vadd.f32 %v565, %v603
        %v634 = vadd.f32 %v566, %v604
        %v635 = vadd.f32 %v567, %v605
        %v636 = vadd.f32 %v568, %v606
        %v637 = vadd.f32 %v569, %v607
        %v638 = vadd.f32 %v570, %v608
        %v639 = vadd.f32 %v571, %v609
        %v640 = vadd.f32 %v572, %v610
        %v641 = vadd.f32 %v573, %v611
        %v642 = vadd.f32 %v574, %v612
        %v643 = vadd.f32 %v575, %v613
        %v644 = vadd.f32 %v576, %v614
        %v645 = vadd.f32 %v577, %v615
        %v646 = vadd.f32 %v578, %v616
        %v647 = vadd.f32 %v579, %v617
        %v648 = vadd.f32 %v580, %v618
        %v649 = vadd.f32 %v581, %v619
        %v650 = vadd.f32 %v582, %v620
        %v651 = vadd.f32 %v583, %v621
        %v652 = vadd.f32 %v584, %v622
        %v653 = vadd.f32 %v585, %v623
        %v654 = vadd.f32 %v586, %v624
        %v655 = vadd.f32 %v587, %v625
        %s656 = scalar_lea.vmem [#allocation5], 3
        %v657 = vld [vmem:[%s656] sm:$0x1]
        %v659 = vlaneseq
        %v660 = vshrl.u32 %v659, 7
        %v661 = vsub.s32 0, %v660
        %v662 = vrot.slane %v657, %v661
        %v664 = vmul.f32 %v662, %v348
        %v665 = vmul.f32 %v662, %v349
        %v666 = vmul.f32 %v662, %v350
        %v667 = vmul.f32 %v662, %v351
        %v668 = vmul.f32 %v662, %v352
        %v669 = vmul.f32 %v662, %v353
        %v670 = vmul.f32 %v662, %v354
        %v671 = vmul.f32 %v662, %v355
        %v672 = vmul.f32 %v662, %v356
        %v673 = vmul.f32 %v662, %v357
        %v674 = vmul.f32 %v662, %v358
        %v675 = vmul.f32 %v662, %v359
        %v676 = vmul.f32 %v662, %v360
        %v677 = vmul.f32 %v662, %v361
        %v678 = vmul.f32 %v662, %v362
        %v679 = vmul.f32 %v662, %v363
        %v680 = vmul.f32 %v662, %v364
        %v681 = vmul.f32 %v662, %v365
        %v682 = vmul.f32 %v662, %v366
        %v683 = vmul.f32 %v662, %v367
        %v684 = vmul.f32 %v662, %v368
        %v685 = vmul.f32 %v662, %v369
        %v686 = vmul.f32 %v662, %v370
        %v687 = vmul.f32 %v662, %v371
        %v688 = vmul.f32 %v662, %v372
        %v689 = vmul.f32 %v662, %v373
        %v690 = vmul.f32 %v662, %v374
        %v691 = vmul.f32 %v662, %v375
        %v692 = vmul.f32 %v662, %v376
        %v693 = vmul.f32 %v662, %v377
        %v694 = vmul.f32 %v662, %v378
        %v695 = vmul.f32 %v662, %v379
        %s696 = scalar_lea.vmem [#allocation5], 4
        %v697 = vld [vmem:[%s696] sm:$0x1]
        %v699 = vlaneseq
        %v700 = vshrl.u32 %v699, 7
        %v701 = vsub.s32 0, %v700
        %v702 = vrot.slane %v697, %v701
        %v704 = vmul.f32 %v702, %v242
        %v705 = vmul.f32 %v702, %v243
        %v706 = vmul.f32 %v702, %v244
        %v707 = vmul.f32 %v702, %v245
        %v708 = vmul.f32 %v702, %v246
        %v709 = vmul.f32 %v702, %v247
        %v710 = vmul.f32 %v702, %v248
        %v711 = vmul.f32 %v702, %v249
        %v712 = vmul.f32 %v702, %v250
        %v713 = vmul.f32 %v702, %v251
        %v714 = vmul.f32 %v702, %v252
        %v715 = vmul.f32 %v702, %v253
        %v716 = vmul.f32 %v702, %v254
        %v717 = vmul.f32 %v702, %v255
        %v718 = vmul.f32 %v702, %v256
        %v719 = vmul.f32 %v702, %v257
        %v720 = vmul.f32 %v702, %v258
        %v721 = vmul.f32 %v702, %v259
        %v722 = vmul.f32 %v702, %v260
        %v723 = vmul.f32 %v702, %v261
        %v724 = vmul.f32 %v702, %v262
        %v725 = vmul.f32 %v702, %v263
        %v726 = vmul.f32 %v702, %v264
        %v727 = vmul.f32 %v702, %v265
        %v728 = vmul.f32 %v702, %v266
        %v729 = vmul.f32 %v702, %v267
        %v730 = vmul.f32 %v702, %v268
        %v731 = vmul.f32 %v702, %v269
        %v732 = vmul.f32 %v702, %v270
        %v733 = vmul.f32 %v702, %v271
        %v734 = vmul.f32 %v702, %v272
        %v735 = vmul.f32 %v702, %v273
        %v736 = vadd.f32 %v664, %v704
        %v737 = vadd.f32 %v665, %v705
        %v738 = vadd.f32 %v666, %v706
        %v739 = vadd.f32 %v667, %v707
        %v740 = vadd.f32 %v668, %v708
        %v741 = vadd.f32 %v669, %v709
        %v742 = vadd.f32 %v670, %v710
        %v743 = vadd.f32 %v671, %v711
        %v744 = vadd.f32 %v672, %v712
        %v745 = vadd.f32 %v673, %v713
        %v746 = vadd.f32 %v674, %v714
        %v747 = vadd.f32 %v675, %v715
        %v748 = vadd.f32 %v676, %v716
        %v749 = vadd.f32 %v677, %v717
        %v750 = vadd.f32 %v678, %v718
        %v751 = vadd.f32 %v679, %v719
        %v752 = vadd.f32 %v680, %v720
        %v753 = vadd.f32 %v681, %v721
        %v754 = vadd.f32 %v682, %v722
        %v755 = vadd.f32 %v683, %v723
        %v756 = vadd.f32 %v684, %v724
        %v757 = vadd.f32 %v685, %v725
        %v758 = vadd.f32 %v686, %v726
        %v759 = vadd.f32 %v687, %v727
        %v760 = vadd.f32 %v688, %v728
        %v761 = vadd.f32 %v689, %v729
        %v762 = vadd.f32 %v690, %v730
        %v763 = vadd.f32 %v691, %v731
        %v764 = vadd.f32 %v692, %v732
        %v765 = vadd.f32 %v693, %v733
        %v766 = vadd.f32 %v694, %v734
        %v767 = vadd.f32 %v695, %v735
        %s768 = scalar_lea.vmem [#allocation5], 5
        %v769 = vld [vmem:[%s768] sm:$0x1]
        %v771 = vlaneseq
        %v772 = vshrl.u32 %v771, 7
        %v773 = vsub.s32 0, %v772
        %v774 = vrot.slane %v769, %v773
        %v776 = vmul.f32 %v774, %v451
        %v777 = vmul.f32 %v774, %v452
        %v778 = vmul.f32 %v774, %v453
        %v779 = vmul.f32 %v774, %v454
        %v780 = vmul.f32 %v774, %v455
        %v781 = vmul.f32 %v774, %v456
        %v782 = vmul.f32 %v774, %v457
        %v783 = vmul.f32 %v774, %v458
        %v784 = vmul.f32 %v774, %v459
        %v785 = vmul.f32 %v774, %v460
        %v786 = vmul.f32 %v774, %v461
        %v787 = vmul.f32 %v774, %v462
        %v788 = vmul.f32 %v774, %v463
        %v789 = vmul.f32 %v774, %v464
        %v790 = vmul.f32 %v774, %v465
        %v791 = vmul.f32 %v774, %v466
        %v792 = vmul.f32 %v774, %v467
        %v793 = vmul.f32 %v774, %v468
        %v794 = vmul.f32 %v774, %v469
        %v795 = vmul.f32 %v774, %v470
        %v796 = vmul.f32 %v774, %v471
        %v797 = vmul.f32 %v774, %v472
        %v798 = vmul.f32 %v774, %v473
        %v799 = vmul.f32 %v774, %v474
        %v800 = vmul.f32 %v774, %v475
        %v801 = vmul.f32 %v774, %v476
        %v802 = vmul.f32 %v774, %v477
        %v803 = vmul.f32 %v774, %v478
        %v804 = vmul.f32 %v774, %v479
        %v805 = vmul.f32 %v774, %v480
        %v806 = vmul.f32 %v774, %v481
        %v807 = vmul.f32 %v774, %v482
        %v808 = vadd.f32 %v736, %v776
        %v809 = vadd.f32 %v737, %v777
        %v810 = vadd.f32 %v738, %v778
        %v811 = vadd.f32 %v739, %v779
        %v812 = vadd.f32 %v740, %v780
        %v813 = vadd.f32 %v741, %v781
        %v814 = vadd.f32 %v742, %v782
        %v815 = vadd.f32 %v743, %v783
        %v816 = vadd.f32 %v744, %v784
        %v817 = vadd.f32 %v745, %v785
        %v818 = vadd.f32 %v746, %v786
        %v819 = vadd.f32 %v747, %v787
        %v820 = vadd.f32 %v748, %v788
        %v821 = vadd.f32 %v749, %v789
        %v822 = vadd.f32 %v750, %v790
        %v823 = vadd.f32 %v751, %v791
        %v824 = vadd.f32 %v752, %v792
        %v825 = vadd.f32 %v753, %v793
        %v826 = vadd.f32 %v754, %v794
        %v827 = vadd.f32 %v755, %v795
        %v828 = vadd.f32 %v756, %v796
        %v829 = vadd.f32 %v757, %v797
        %v830 = vadd.f32 %v758, %v798
        %v831 = vadd.f32 %v759, %v799
        %v832 = vadd.f32 %v760, %v800
        %v833 = vadd.f32 %v761, %v801
        %v834 = vadd.f32 %v762, %v802
        %v835 = vadd.f32 %v763, %v803
        %v836 = vadd.f32 %v764, %v804
        %v837 = vadd.f32 %v765, %v805
        %v838 = vadd.f32 %v766, %v806
        %v839 = vadd.f32 %v767, %v807
        %s840 = scalar_lea.vmem [#allocation5], 6
        %v841 = vld [vmem:[%s840] sm:$0x1]
        %v843 = vlaneseq
        %v844 = vshrl.u32 %v843, 7
        %v845 = vsub.s32 0, %v844
        %v846 = vrot.slane %v841, %v845
        %v848 = vmul.f32 %v846, %v350
        %v849 = vmul.f32 %v846, %v351
        %v850 = vmul.f32 %v846, %v352
        %v851 = vmul.f32 %v846, %v353
        %v852 = vmul.f32 %v846, %v354
        %v853 = vmul.f32 %v846, %v355
        %v854 = vmul.f32 %v846, %v356
        %v855 = vmul.f32 %v846, %v357
        %v856 = vmul.f32 %v846, %v358
        %v857 = vmul.f32 %v846, %v359
        %v858 = vmul.f32 %v846, %v360
        %v859 = vmul.f32 %v846, %v361
        %v860 = vmul.f32 %v846, %v362
        %v861 = vmul.f32 %v846, %v363
        %v862 = vmul.f32 %v846, %v364
        %v863 = vmul.f32 %v846, %v365
        %v864 = vmul.f32 %v846, %v366
        %v865 = vmul.f32 %v846, %v367
        %v866 = vmul.f32 %v846, %v368
        %v867 = vmul.f32 %v846, %v369
        %v868 = vmul.f32 %v846, %v370
        %v869 = vmul.f32 %v846, %v371
        %v870 = vmul.f32 %v846, %v372
        %v871 = vmul.f32 %v846, %v373
        %v872 = vmul.f32 %v846, %v374
        %v873 = vmul.f32 %v846, %v375
        %v874 = vmul.f32 %v846, %v376
        %v875 = vmul.f32 %v846, %v377
        %v876 = vmul.f32 %v846, %v378
        %v877 = vmul.f32 %v846, %v379
        %s878 = scalar_lea.vmem [#allocation5], 7
        %v879 = vld [vmem:[%s878] sm:$0x1]
        %v881 = vlaneseq
        %v882 = vshrl.u32 %v881, 7
        %v883 = vsub.s32 0, %v882
        %v884 = vrot.slane %v879, %v883
        %v886 = vmul.f32 %v884, %v244
        %v887 = vmul.f32 %v884, %v245
        %v888 = vmul.f32 %v884, %v246
        %v889 = vmul.f32 %v884, %v247
        %v890 = vmul.f32 %v884, %v248
        %v891 = vmul.f32 %v884, %v249
        %v892 = vmul.f32 %v884, %v250
        %v893 = vmul.f32 %v884, %v251
        %v894 = vmul.f32 %v884, %v252
        %v895 = vmul.f32 %v884, %v253
        %v896 = vmul.f32 %v884, %v254
        %v897 = vmul.f32 %v884, %v255
        %v898 = vmul.f32 %v884, %v256
        %v899 = vmul.f32 %v884, %v257
        %v900 = vmul.f32 %v884, %v258
        %v901 = vmul.f32 %v884, %v259
        %v902 = vmul.f32 %v884, %v260
        %v903 = vmul.f32 %v884, %v261
        %v904 = vmul.f32 %v884, %v262
        %v905 = vmul.f32 %v884, %v263
        %v906 = vmul.f32 %v884, %v264
        %v907 = vmul.f32 %v884, %v265
        %v908 = vmul.f32 %v884, %v266
        %v909 = vmul.f32 %v884, %v267
        %v910 = vmul.f32 %v884, %v268
        %v911 = vmul.f32 %v884, %v269
        %v912 = vmul.f32 %v884, %v270
        %v913 = vmul.f32 %v884, %v271
        %v914 = vmul.f32 %v884, %v272
        %v915 = vmul.f32 %v884, %v273
        %v916 = vadd.f32 %v848, %v886
        %v917 = vadd.f32 %v849, %v887
        %v918 = vadd.f32 %v850, %v888
        %v919 = vadd.f32 %v851, %v889
        %v920 = vadd.f32 %v852, %v890
        %v921 = vadd.f32 %v853, %v891
        %v922 = vadd.f32 %v854, %v892
        %v923 = vadd.f32 %v855, %v893
        %v924 = vadd.f32 %v856, %v894
        %v925 = vadd.f32 %v857, %v895
        %v926 = vadd.f32 %v858, %v896
        %v927 = vadd.f32 %v859, %v897
        %v928 = vadd.f32 %v860, %v898
        %v929 = vadd.f32 %v861, %v899
        %v930 = vadd.f32 %v862, %v900
        %v931 = vadd.f32 %v863, %v901
        %v932 = vadd.f32 %v864, %v902
        %v933 = vadd.f32 %v865, %v903
        %v934 = vadd.f32 %v866, %v904
        %v935 = vadd.f32 %v867, %v905
        %v936 = vadd.f32 %v868, %v906
        %v937 = vadd.f32 %v869, %v907
        %v938 = vadd.f32 %v870, %v908
        %v939 = vadd.f32 %v871, %v909
        %v940 = vadd.f32 %v872, %v910
        %v941 = vadd.f32 %v873, %v911
        %v942 = vadd.f32 %v874, %v912
        %v943 = vadd.f32 %v875, %v913
        %v944 = vadd.f32 %v876, %v914
        %v945 = vadd.f32 %v877, %v915
        %s946 = scalar_lea.vmem [#allocation5], 8
        %v947 = vld [vmem:[%s946] sm:$0x1]
        %v949 = vlaneseq
        %v950 = vshrl.u32 %v949, 7
        %v951 = vsub.s32 0, %v950
        %v952 = vrot.slane %v947, %v951
        %v954 = vmul.f32 %v952, %v453
        %v955 = vmul.f32 %v952, %v454
        %v956 = vmul.f32 %v952, %v455
        %v957 = vmul.f32 %v952, %v456
        %v958 = vmul.f32 %v952, %v457
        %v959 = vmul.f32 %v952, %v458
        %v960 = vmul.f32 %v952, %v459
        %v961 = vmul.f32 %v952, %v460
        %v962 = vmul.f32 %v952, %v461
        %v963 = vmul.f32 %v952, %v462
        %v964 = vmul.f32 %v952, %v463
        %v965 = vmul.f32 %v952, %v464
        %v966 = vmul.f32 %v952, %v465
        %v967 = vmul.f32 %v952, %v466
        %v968 = vmul.f32 %v952, %v467
        %v969 = vmul.f32 %v952, %v468
        %v970 = vmul.f32 %v952, %v469
        %v971 = vmul.f32 %v952, %v470
        %v972 = vmul.f32 %v952, %v471
        %v973 = vmul.f32 %v952, %v472
        %v974 = vmul.f32 %v952, %v473
        %v975 = vmul.f32 %v952, %v474
        %v976 = vmul.f32 %v952, %v475
        %v977 = vmul.f32 %v952, %v476
        %v978 = vmul.f32 %v952, %v477
        %v979 = vmul.f32 %v952, %v478
        %v980 = vmul.f32 %v952, %v479
        %v981 = vmul.f32 %v952, %v480
        %v982 = vmul.f32 %v952, %v481
        %v983 = vmul.f32 %v952, %v482
        %v984 = vadd.f32 %v916, %v954
        %v985 = vadd.f32 %v917, %v955
        %v986 = vadd.f32 %v918, %v956
        %v987 = vadd.f32 %v919, %v957
        %v988 = vadd.f32 %v920, %v958
        %v989 = vadd.f32 %v921, %v959
        %v990 = vadd.f32 %v922, %v960
        %v991 = vadd.f32 %v923, %v961
        %v992 = vadd.f32 %v924, %v962
        %v993 = vadd.f32 %v925, %v963
        %v994 = vadd.f32 %v926, %v964
        %v995 = vadd.f32 %v927, %v965
        %v996 = vadd.f32 %v928, %v966
        %v997 = vadd.f32 %v929, %v967
        %v998 = vadd.f32 %v930, %v968
        %v999 = vadd.f32 %v931, %v969
        %v1000 = vadd.f32 %v932, %v970
        %v1001 = vadd.f32 %v933, %v971
        %v1002 = vadd.f32 %v934, %v972
        %v1003 = vadd.f32 %v935, %v973
        %v1004 = vadd.f32 %v936, %v974
        %v1005 = vadd.f32 %v937, %v975
        %v1006 = vadd.f32 %v938, %v976
        %v1007 = vadd.f32 %v939, %v977
        %v1008 = vadd.f32 %v940, %v978
        %v1009 = vadd.f32 %v941, %v979
        %v1010 = vadd.f32 %v942, %v980
        %v1011 = vadd.f32 %v943, %v981
        %v1012 = vadd.f32 %v944, %v982
        %v1013 = vadd.f32 %v945, %v983
        %v1014 = vld [vmem:[%s241] sm:$0x1]
        %v1016 = vlaneseq
        %v1017 = vshrl.u32 %v1016, 7
        %v1018 = vsub.s32 0, %v1017
        %v1019 = vrot.slane %v1014, %v1018
        %v1021 = vadd.f32 %v808, %v1019
        %v1022 = vadd.f32 %v809, %v1019
        %v1023 = vadd.f32 %v810, %v1019
        %v1024 = vadd.f32 %v811, %v1019
        %v1025 = vadd.f32 %v812, %v1019
        %v1026 = vadd.f32 %v813, %v1019
        %v1027 = vadd.f32 %v814, %v1019
        %v1028 = vadd.f32 %v815, %v1019
        %v1029 = vadd.f32 %v816, %v1019
        %v1030 = vadd.f32 %v817, %v1019
        %v1031 = vadd.f32 %v818, %v1019
        %v1032 = vadd.f32 %v819, %v1019
        %v1033 = vadd.f32 %v820, %v1019
        %v1034 = vadd.f32 %v821, %v1019
        %v1035 = vadd.f32 %v822, %v1019
        %v1036 = vadd.f32 %v823, %v1019
        %v1037 = vadd.f32 %v824, %v1019
        %v1038 = vadd.f32 %v825, %v1019
        %v1039 = vadd.f32 %v826, %v1019
        %v1040 = vadd.f32 %v827, %v1019
        %v1041 = vadd.f32 %v828, %v1019
        %v1042 = vadd.f32 %v829, %v1019
        %v1043 = vadd.f32 %v830, %v1019
        %v1044 = vadd.f32 %v831, %v1019
        %v1045 = vadd.f32 %v832, %v1019
        %v1046 = vadd.f32 %v833, %v1019
        %v1047 = vadd.f32 %v834, %v1019
        %v1048 = vadd.f32 %v835, %v1019
        %v1049 = vadd.f32 %v836, %v1019
        %v1050 = vadd.f32 %v837, %v1019
        %v1051 = vadd.f32 %v838, %v1019
        %v1052 = vadd.f32 %v839, %v1019
        %v1053 = vadd.f32 %v1021, 0.0
        %v1054 = vadd.f32 %v1022, 0.0
        %v1055 = vadd.f32 %v1023, %v626
        %v1056 = vadd.f32 %v1024, %v627
        %v1057 = vadd.f32 %v1025, %v628
        %v1058 = vadd.f32 %v1026, %v629
        %v1059 = vadd.f32 %v1027, %v630
        %v1060 = vadd.f32 %v1028, %v631
        %v1061 = vadd.f32 %v1029, %v632
        %v1062 = vadd.f32 %v1030, %v633
        %v1063 = vadd.f32 %v1031, %v634
        %v1064 = vadd.f32 %v1032, %v635
        %v1065 = vadd.f32 %v1033, %v636
        %v1066 = vadd.f32 %v1034, %v637
        %v1067 = vadd.f32 %v1035, %v638
        %v1068 = vadd.f32 %v1036, %v639
        %v1069 = vadd.f32 %v1037, %v640
        %v1070 = vadd.f32 %v1038, %v641
        %v1071 = vadd.f32 %v1039, %v642
        %v1072 = vadd.f32 %v1040, %v643
        %v1073 = vadd.f32 %v1041, %v644
        %v1074 = vadd.f32 %v1042, %v645
        %v1075 = vadd.f32 %v1043, %v646
        %v1076 = vadd.f32 %v1044, %v647
        %v1077 = vadd.f32 %v1045, %v648
        %v1078 = vadd.f32 %v1046, %v649
        %v1079 = vadd.f32 %v1047, %v650
        %v1080 = vadd.f32 %v1048, %v651
        %v1081 = vadd.f32 %v1049, %v652
        %v1082 = vadd.f32 %v1050, %v653
        %v1083 = vadd.f32 %v1051, %v654
        %v1084 = vadd.f32 %v1052, %v655
        %v1085 = vadd.f32 %v1053, %v984
        %v1086 = vadd.f32 %v1054, %v985
        %v1087 = vadd.f32 %v1055, %v986
        %v1088 = vadd.f32 %v1056, %v987
        %v1089 = vadd.f32 %v1057, %v988
        %v1090 = vadd.f32 %v1058, %v989
        %v1091 = vadd.f32 %v1059, %v990
        %v1092 = vadd.f32 %v1060, %v991
        %v1093 = vadd.f32 %v1061, %v992
        %v1094 = vadd.f32 %v1062, %v993
        %v1095 = vadd.f32 %v1063, %v994
        %v1096 = vadd.f32 %v1064, %v995
        %v1097 = vadd.f32 %v1065, %v996
        %v1098 = vadd.f32 %v1066, %v997
        %v1099 = vadd.f32 %v1067, %v998
        %v1100 = vadd.f32 %v1068, %v999
        %v1101 = vadd.f32 %v1069, %v1000
        %v1102 = vadd.f32 %v1070, %v1001
        %v1103 = vadd.f32 %v1071, %v1002
        %v1104 = vadd.f32 %v1072, %v1003
        %v1105 = vadd.f32 %v1073, %v1004
        %v1106 = vadd.f32 %v1074, %v1005
        %v1107 = vadd.f32 %v1075, %v1006
        %v1108 = vadd.f32 %v1076, %v1007
        %v1109 = vadd.f32 %v1077, %v1008
        %v1110 = vadd.f32 %v1078, %v1009
        %v1111 = vadd.f32 %v1079, %v1010
        %v1112 = vadd.f32 %v1080, %v1011
        %v1113 = vadd.f32 %v1081, %v1012
        %v1114 = vadd.f32 %v1082, %v1013
        %v1115 = vadd.f32 %v1083, 0.0
        %v1116 = vadd.f32 %v1084, 0.0
        %1117 = vst [vmem:[%s238] sm:$0xff] %v1085
        %1118 = vst [vmem:[%s238 + $0x8] sm:$0xff] %v1086
        %1119 = vst [vmem:[%s238 + $0x10] sm:$0xff] %v1087
        %1120 = vst [vmem:[%s238 + $0x18] sm:$0xff] %v1088
        %1121 = vst [vmem:[%s238 + $0x20] sm:$0xff] %v1089
        %1122 = vst [vmem:[%s238 + $0x28] sm:$0xff] %v1090
        %1123 = vst [vmem:[%s238 + $0x30] sm:$0xff] %v1091
        %1124 = vst [vmem:[%s238 + $0x38] sm:$0xff] %v1092
        %1125 = vst [vmem:[%s238 + $0x40] sm:$0xff] %v1093
        %1126 = vst [vmem:[%s238 + $0x48] sm:$0xff] %v1094
        %1127 = vst [vmem:[%s238 + $0x50] sm:$0xff] %v1095
        %1128 = vst [vmem:[%s238 + $0x58] sm:$0xff] %v1096
        %1129 = vst [vmem:[%s238 + $0x60] sm:$0xff] %v1097
        %1130 = vst [vmem:[%s238 + $0x68] sm:$0xff] %v1098
        %1131 = vst [vmem:[%s238 + $0x70] sm:$0xff] %v1099
        %1132 = vst [vmem:[%s238 + $0x78] sm:$0xff] %v1100
        %1133 = vst [vmem:[%s238 + $0x80] sm:$0xff] %v1101
        %1134 = vst [vmem:[%s238 + $0x88] sm:$0xff] %v1102
        %1135 = vst [vmem:[%s238 + $0x90] sm:$0xff] %v1103
        %1136 = vst [vmem:[%s238 + $0x98] sm:$0xff] %v1104
        %1137 = vst [vmem:[%s238 + $0xa0] sm:$0xff] %v1105
        %1138 = vst [vmem:[%s238 + $0xa8] sm:$0xff] %v1106
        %1139 = vst [vmem:[%s238 + $0xb0] sm:$0xff] %v1107
        %1140 = vst [vmem:[%s238 + $0xb8] sm:$0xff] %v1108
        %1141 = vst [vmem:[%s238 + $0xc0] sm:$0xff] %v1109
        %1142 = vst [vmem:[%s238 + $0xc8] sm:$0xff] %v1110
        %1143 = vst [vmem:[%s238 + $0xd0] sm:$0xff] %v1111
        %1144 = vst [vmem:[%s238 + $0xd8] sm:$0xff] %v1112
        %1145 = vst [vmem:[%s238 + $0xe0] sm:$0xff] %v1113
        %1146 = vst [vmem:[%s238 + $0xe8] sm:$0xff] %v1114
        %1147 = vst [vmem:[%s238 + $0xf0] sm:$0xff] %v1115
        %1148 = vst [vmem:[%s238 + $0xf8] sm:$0xff] %v1116
        %s1149 = sand.u32 %s123, 1
        %s1150 = scalar_lea.sflag [#allocation4], %s1149
        %s1151 = sand.u32 %s123, 1
        %s1152 = smul.addr %s1151, 256
        %s1153 = scalar_lea.vmem [#allocation7], %s1152
        // Predicated region
        $region41: #{tpu_custom_call.1} parent=31 // pred_check
          %p1154 = pneg %p133
        $region42: #{tpu_custom_call.1} parent=31 // pred_check_branch
          %1156 = sbr.rel (%p1154) target = $region44
        $region43: #{tpu_custom_call.1} parent=31 // pred_region
          %s1158 = ssub.s32 4096, 4096
          %1159 = vsyncadd %s1150, %s1158
          %s1160 = smul.addr %s25, 32
          %s1161 = sadd.s32 %s26, %s1160
          %s1162 = smul.addr %s1161, 128
          %s1163 = scalar_lea.hbm %s3, %s1162
          %s1164 = sshll.u32 %s1153, 4
          %s1165 = int_to_ptr.vmem [resolvable:$true] %s1164
          %1170 = dma.vmem_to_hbm [thread:$0]  %s1165, 4096, %s1163, %s1150, 128, 128, 8
        $region44: #{tpu_custom_call.1} parent=31 // pred_fallthru
          _
      $region32: #{tpu_custom_call.1} parent=5 // pred_fallthru
        _
      %p1171 = scmp.le.s32.totalorder 2, %s16
      // Predicated region
      $region45: #{tpu_custom_call.1} parent=5 // pred_check
        %p1172 = pneg %p1171
      $region46: #{tpu_custom_call.1} parent=5 // pred_check_branch
        %1174 = sbr.rel (%p1172) target = $region48
      $region47: #{tpu_custom_call.1} parent=5 // pred_region
        %s1175 = ssub.s32 %s16, 2
        // Predicated region
        $region49: #{tpu_custom_call.1} parent=47 // pred_check
          %p1176 = pneg %p139
        $region50: #{tpu_custom_call.1} parent=47 // pred_check_branch
          %1178 = sbr.rel (%p1176) target = $region52
        $region51: #{tpu_custom_call.1} parent=47 // pred_region
          %s1179 = sand.u32 %s124, 1
          %s1180 = scalar_lea.sflag [#allocation4], %s1179
          %s1181 = sand.u32 %s124, 1
          %s1182 = smul.addr %s1181, 256
          %s1183 = scalar_lea.vmem [#allocation7], %s1182
          %1184 = dma.done %s1180, 4096
        $region52: #{tpu_custom_call.1} parent=47 // pred_fallthru
          _
      $region48: #{tpu_custom_call.1} parent=5 // pred_fallthru
        _
    $region6: #{tpu_custom_call.1} parent=1 // loop_footer
      %s20 = sadd.s32 1, %s16
    $region7: #{tpu_custom_call.1} parent=1 // loop_footer_branch
      %15 = sbr.rel target = $region3
    $region8: #{tpu_custom_call.1} parent=1 // loop_exit
      _
    %1185 = vsyncpa [#allocation3], 1
    %s1186 = scalar_lea.sflag [#allocation3], 1
    %1187 = vsyncpa %s1186, 1
    %1188 = vsyncpa [#allocation6], 1
    %1189 = vsyncpa [#allocation4], 1
    %s1190 = scalar_lea.sflag [#allocation4], 1
    %1191 = vsyncpa %s1190, 1

</llo_original>
